<compile_context>
chip_gen: v7x
topology: tpu7x:2x2x1
jax: 0.10.0
libtpu: 0.0.40
codegen_flags: <defaults>
</compile_context>

<pallas_src>
import jax
import jax.numpy as jnp
from jax.experimental import pallas as pl
from jax.experimental.pallas import tpu as pltpu

N, C_IN, H, W = 2, 4, 16, 16     # image: NCHW at the wrapper boundary
C_OUT = 8                        # mask channels produced by the model
D_Q = 32                         # target_query feature dim
T_TRANSFORMS = 3                 # identity, hflip (W axis), vflip (H axis)
MERGE_MODE = "mean"              # the collapse below is only valid for 'mean'

K_CONV = W * C_IN                                  # 64  image lanes
K_Q = D_Q                                          # 32  query lanes
K_POS = H                                          # 16  one-hot(h) lanes
K_USED = K_CONV + K_Q + K_POS                      # 112
K_TOTAL = ((K_USED + 127) // 128) * 128            # 128 (pad to full vreg width)
WCO = W * C_OUT                                    # 128 lane-dense output width


def _tta_fused_kernel(x_ref, w_ref, out_ref):
    """Collapsed TTA forward as ONE fused MXU matmul.

    x_ref  : (N*H, K_TOTAL)   bf16   [ img | target_query per row | onehot(h) | 0 ]
    w_ref  : (K_TOTAL, W*C_OUT) bf16 [ kron(I_W,Wc) ; tile(Wq,W) ; pos_avg ; 0 ]
    out_ref: (N*H, W*C_OUT)   f32    lane-dense output slab
    """
    out_ref[...] = jnp.dot(x_ref[...], w_ref[...],
                           preferred_element_type=jnp.float32)


def prepare_tta_params(w_conv, w_query, pos_bias_hwc, n):
    """One-time constant preparation (hoisted out of the per-call forward).

    Returns:
      w_fused   : (K_TOTAL, W*C_OUT) bf16  stacked fused weight
      hot_const : (n*H, K_POS + pad) bf16  constant one-hot(h) input columns
    """
    assert MERGE_MODE == "mean", \
        "algebraic TTA collapse is only valid for merge_mode='mean'"
    h, w, c_out = pos_bias_hwc.shape
    c_in = w_conv.shape[0]
    d_q = w_query.shape[0]
    k_used = w * c_in + d_q + h
    k_pad = K_TOTAL - k_used
    assert k_pad >= 0 and w * c_in <= 128, \
        "fused single-matmul layout only valid while W*C_IN + D_Q + H <= 128"

    # 1x1 conv over channels as ONE block-diagonal lane-dense matmul.
    # (~94% zeros; acceptable while W*C_IN <= 128 -- beyond that, tile over W.)
    wcb = jnp.kron(jnp.eye(w, dtype=jnp.float32), w_conv.astype(jnp.float32))
    # W-tiled query projection -> query bias lands lane-dense directly.
    wqt = jnp.tile(w_query.astype(jnp.float32), (1, w))
    # TTA 'mean' over identity/hflip/vflip: flips commute with the pointwise
    # model, so only the positional bias needs flipping + averaging.
    p = pos_bias_hwc.astype(jnp.float32)
    pos_avg = ((p + p[:, ::-1, :] + p[::-1, :, :]) * (1.0 / T_TRANSFORMS)
               ).reshape(h, w * c_out)

    w_fused = jnp.concatenate(
        [wcb, wqt, pos_avg, jnp.zeros((k_pad, w * c_out), jnp.float32)],
        axis=0).astype(jnp.bfloat16)

    # Constant one-hot(h) columns: selects pos_avg row h through the matmul.
    hot = jnp.tile(jnp.eye(h, dtype=jnp.float32), (n, 1))
    hot_const = jnp.concatenate(
        [hot, jnp.zeros((n * h, k_pad), jnp.float32)], axis=1
    ).astype(jnp.bfloat16)

    return jax.device_put(w_fused), jax.device_put(hot_const)


@jax.jit
def tta_forward(image_nchw, target_query, w_fused, hot_const):
    """TTAWrapper.forward for batch={'image': NCHW, 'target_query': (N, D_Q)}."""
    n, c_in, h, w = image_nchw.shape
    k_total, wco = w_fused.shape
    c_out = wco // w
    m = n * h

    # Per-call layout plumbing (fuses into one tiny XLA op producing an 8 KiB
    # slab): NCHW -> NHWC -> (N*H, W*C_IN), query broadcast per row, constant
    # one-hot block appended -> fused MXU input of lane width K_TOTAL.
    img2 = jnp.transpose(image_nchw, (0, 2, 3, 1)).reshape(m, w * c_in)
    tq_rows = jnp.broadcast_to(
        target_query[:, None, :], (n, h, target_query.shape[-1])).reshape(m, -1)
    x_aug = jnp.concatenate([img2.astype(jnp.bfloat16),
                             tq_rows.astype(jnp.bfloat16),
                             hot_const], axis=1)

    cost = pl.CostEstimate(
        flops=2 * m * k_total * wco,
        transcendentals=0,
        bytes_accessed=m * k_total * 2 + k_total * wco * 2 + m * wco * 4)

    out2 = pl.pallas_call(
        _tta_fused_kernel,
        out_shape=jax.ShapeDtypeStruct((m, wco), jnp.float32),
        in_specs=[pl.BlockSpec(memory_space=pltpu.MemorySpace.VMEM),
                  pl.BlockSpec(memory_space=pltpu.MemorySpace.VMEM)],
        out_specs=pl.BlockSpec(memory_space=pltpu.MemorySpace.VMEM),
        cost_estimate=cost,
    )(x_aug, w_fused)

    # Lane-dense slab -> NHWC -> NCHW (kept for parity with the PyTorch
    # boundary).  TODO(synk): drop both transposes when the surrounding
    # pipeline consumes NHWC directly; each costs about as much as the kernel.
    return jnp.transpose(out2.reshape(n, h, w, c_out), (0, 3, 1, 2))


# --------------------------- pure-JAX reference -----------------------------
# Explicit TTA loop (augment -> model -> de-augment -> mean), i.e. the literal
# semantics of TTAWrapper.forward for this model, used to check the collapse.
def _model_ref(img_nhwc, tq, wc, wq, pos):
    seg = jnp.einsum('nhwc,cd->nhwd', img_nhwc, wc)
    return seg + pos[None] + (tq @ wq)[:, None, None, :]


def _tta_ref(image_nchw, tq, wc, wq, pos):
    img = jnp.transpose(image_nchw, (0, 2, 3, 1))
    outs = []
    for t in range(T_TRANSFORMS):
        if t == 1:
            a = img[:, :, ::-1, :]
        elif t == 2:
            a = img[:, ::-1, :, :]
        else:
            a = img
        s = _model_ref(a, tq, wc, wq, pos)
        if t == 1:
            s = s[:, :, ::-1, :]
        elif t == 2:
            s = s[:, ::-1, :, :]
        outs.append(s)
    mean = sum(outs) / T_TRANSFORMS
    return jnp.transpose(mean, (0, 3, 1, 2))


if __name__ == "__main__":
    key = jax.random.PRNGKey(0)
    k1, k2, k3, k4, k5 = jax.random.split(key, 5)
    image = jax.random.normal(k1, (N, C_IN, H, W), jnp.float32)          # batch['image']
    target_query = jax.random.normal(k2, (N, D_Q), jnp.float32)          # batch['target_query']
    w_conv = jax.random.normal(k3, (C_IN, C_OUT), jnp.float32) * 0.2     # 1x1 conv weight
    w_query = jax.random.normal(k4, (D_Q, C_OUT), jnp.float32) * 0.1     # query projection
    pos_bias = jax.random.normal(k5, (H, W, C_OUT), jnp.float32) * 0.5   # positional bias

    # One-time constant preparation (hoisted out of the per-call forward).
    w_fused, hot_const = prepare_tta_params(w_conv, w_query, pos_bias, N)

    out = tta_forward(image, target_query, w_fused, hot_const)
    out = jax.block_until_ready(out)

    ref = _tta_ref(image, target_query, w_conv, w_query, pos_bias)
    assert out.shape == (N, C_OUT, H, W)
    # bf16 operands on the MXU -> loosen tolerance vs the f32 reference.
    assert jnp.allclose(out, ref, rtol=2e-2, atol=2e-2), \
        float(jnp.max(jnp.abs(out - ref)))

    print("KERNEL_OK")
</pallas_src>

<mosaic_0001>
module attributes {stable_mosaic.version = 11 : i64} {
  func.func @_tta_fused_kernel(%arg0: memref<32x128xbf16, #tpu.memory_space<vmem>>, %arg1: memref<128x128xbf16, #tpu.memory_space<vmem>>, %arg2: memref<32x128xf32, #tpu.memory_space<vmem>>) attributes {dimension_semantics = [], scalar_prefetch = 0 : i64, scratch_operands = 0 : i64, tpu.core_type = #tpu.core_type<tc>} {
    %c0 = arith.constant 0 : index
    %c0_0 = arith.constant 0 : index
    %0 = vector.load %arg0[%c0, %c0_0] : memref<32x128xbf16, #tpu.memory_space<vmem>>, vector<32x128xbf16>
    %c0_1 = arith.constant 0 : index
    %c0_2 = arith.constant 0 : index
    %1 = vector.load %arg1[%c0_1, %c0_2] : memref<128x128xbf16, #tpu.memory_space<vmem>>, vector<128x128xbf16>
    %cst = arith.constant dense<0.000000e+00> : vector<32x128xf32>
    %2 = tpu.matmul %0, %1, %cst {dimension_numbers = #tpu.dot_dimension_numbers<[1], [0], [0], [1], [0, 0, 1, 1], [], []>} : vector<32x128xbf16>, vector<128x128xbf16>, vector<32x128xf32> -> vector<32x128xf32>
    %c0_3 = arith.constant 0 : index
    %c0_4 = arith.constant 0 : index
    %3 = vector.load %arg2[%c0_3, %c0_4] : memref<32x128xf32, #tpu.memory_space<vmem>>, vector<32x128xf32>
    tpu.vector_store %arg2[%c0_3, %c0_4], %2 {strides = array<i32>} : memref<32x128xf32, #tpu.memory_space<vmem>>, vector<32x128xf32>,
    return
  }
}

</mosaic_0001>

<llo_original>
// kernel: tta_forward.1
$region0: #{tta_forward.1}
  #allocation0 [shape = 'u32[]', space=smem, size = 0x4, offset = 0x4, fixed_abs, tag = 'smem constant byte address 0x4 - core index']
  #allocation1 [shape = 'u32[144,128]{1,0:T(1,128)}', space=vmem, size = 0x12000, scoped, tag = 'internal scratch']
  %s0 = inlined_call_operand.vmem [shape: bf16[32,128], index: 0, kind: input, shape index: {}]
  %s1 = inlined_call_operand.vmem [shape: bf16[128,128], index: 1, kind: input, shape index: {}]
  %s2 = inlined_call_operand.vmem [shape: f32[32,128], index: 2, kind: output, shape index: {}]
  %s3 = sld [smem:[#allocation0]]
  $region18: #{tta_forward.1} parent=0
    _
  %s5 = ssub.s32 1, %s3
  %s6 = scalar_select 0, %s5, %s3
  // Predicated region
  $region2: #{tta_forward.1} parent=0 // pred_check
    _
  $region3: #{tta_forward.1} parent=0 // pred_check_branch
    %8 = sbr.rel (0) target = $region5
  $region4: #{tta_forward.1} parent=0 // pred_region
    _
  $region5: #{tta_forward.1} parent=0 // pred_fallthru
    _
  // Predicated region
  $region6: #{tta_forward.1} parent=0 // pred_check
    _
  $region7: #{tta_forward.1} parent=0 // pred_check_branch
    %10 = sbr.rel (0) target = $region9
  $region8: #{tta_forward.1} parent=0 // pred_region
    _
  $region9: #{tta_forward.1} parent=0 // pred_fallthru
    _
  %v12 = vld [vmem:[%s0] sm:$0xf]
  %v13 = vld [vmem:[%s0 + $0x4] sm:$0xf]
  %v14 = vld [vmem:[%s0 + $0x8] sm:$0xf]
  %v15 = vld [vmem:[%s0 + $0xc] sm:$0xf]
  %v16 = vld [vmem:[%s1] sm:$0xf]
  %v17 = vld [vmem:[%s1 + $0x4] sm:$0xf]
  %v18 = vld [vmem:[%s1 + $0x8] sm:$0xf]
  %v19 = vld [vmem:[%s1 + $0xc] sm:$0xf]
  %v20 = vld [vmem:[%s1 + $0x10] sm:$0xf]
  %v21 = vld [vmem:[%s1 + $0x14] sm:$0xf]
  %v22 = vld [vmem:[%s1 + $0x18] sm:$0xf]
  %v23 = vld [vmem:[%s1 + $0x1c] sm:$0xf]
  %v24 = vld [vmem:[%s1 + $0x20] sm:$0xf]
  %v25 = vld [vmem:[%s1 + $0x24] sm:$0xf]
  %v26 = vld [vmem:[%s1 + $0x28] sm:$0xf]
  %v27 = vld [vmem:[%s1 + $0x2c] sm:$0xf]
  %v28 = vld [vmem:[%s1 + $0x30] sm:$0xf]
  %v29 = vld [vmem:[%s1 + $0x34] sm:$0xf]
  %v30 = vld [vmem:[%s1 + $0x38] sm:$0xf]
  %v31 = vld [vmem:[%s1 + $0x3c] sm:$0xf]
  %v36 = vunpack.c.l.b16 %v12
  %v37 = vunpack.c.l.b16 %v13
  %v38 = vunpack.c.l.b16 %v14
  %v39 = vunpack.c.l.b16 %v15
  %v40 = vpack.c.b16 %v37, %v36
  %v41 = vpack.c.b16 %v39, %v38
  %v60 = vunpack.c.l.b16 %v16
  %v61 = vunpack.c.l.b16 %v17
  %v62 = vunpack.c.l.b16 %v18
  %v63 = vunpack.c.l.b16 %v19
  %v64 = vunpack.c.l.b16 %v20
  %v65 = vunpack.c.l.b16 %v21
  %v66 = vunpack.c.l.b16 %v22
  %v67 = vunpack.c.l.b16 %v23
  %v68 = vunpack.c.l.b16 %v24
  %v69 = vunpack.c.l.b16 %v25
  %v70 = vunpack.c.l.b16 %v26
  %v71 = vunpack.c.l.b16 %v27
  %v72 = vunpack.c.l.b16 %v28
  %v73 = vunpack.c.l.b16 %v29
  %v74 = vunpack.c.l.b16 %v30
  %v75 = vunpack.c.l.b16 %v31
  %v76 = vpack.c.b16 %v61, %v60
  %v77 = vpack.c.b16 %v63, %v62
  %v78 = vpack.c.b16 %v65, %v64
  %v79 = vpack.c.b16 %v67, %v66
  %v80 = vpack.c.b16 %v69, %v68
  %v81 = vpack.c.b16 %v71, %v70
  %v82 = vpack.c.b16 %v73, %v72
  %v83 = vpack.c.b16 %v75, %v74
  %92 = vmatprep.subr.bf16.mxu0 0
  %93 = vmatpush1.bf16.msra.mxu0 %v76
  %94 = vmatprep.subr.bf16.mxu0 0
  %95 = vmatpush1.bf16.msra.mxu0 %v77
  %96 = vmatprep.subr.bf16.mxu0 0
  %97 = vmatpush1.bf16.msra.mxu0 %v78
  %98 = vmatprep.subr.bf16.mxu0 0
  %99 = vmatpush1.bf16.msra.mxu0 %v79
  %100 = vmatprep.subr.bf16.mxu0 0
  %101 = vmatpush1.bf16.msra.mxu0 %v80
  %102 = vmatprep.subr.bf16.mxu0 0
  %103 = vmatpush1.bf16.msra.mxu0 %v81
  %104 = vmatprep.subr.bf16.mxu0 0
  %105 = vmatpush1.bf16.msra.mxu0 %v82
  %106 = vmatprep.subr.bf16.mxu0 0
  %107 = vmatpush1.bf16.msra.mxu0 %v83
  %108 = vmatprep.subr.bf16.mxu0 0
  %109 = vmatpush1.bf16.msra.mxu0 0
  %110 = vmatprep.subr.bf16.mxu0 0
  %111 = vmatpush1.bf16.msra.mxu0 0
  %112 = vmatprep.subr.bf16.mxu0 0
  %113 = vmatpush1.bf16.msra.mxu0 0
  %114 = vmatprep.subr.bf16.mxu0 0
  %115 = vmatpush1.bf16.msra.mxu0 0
  %116 = vmatprep.subr.bf16.mxu0 0
  %117 = vmatpush1.bf16.msra.mxu0 0
  %118 = vmatprep.subr.bf16.mxu0 0
  %119 = vmatpush1.bf16.msra.mxu0 0
  %120 = vmatprep.subr.bf16.mxu0 0
  %121 = vmatpush1.bf16.msra.mxu0 0
  %122 = vmatprep.subr.bf16.mxu0 0
  %123 = vmatpush1.bf16.msra.mxu0 0
  %124 = vmatprep.mubr.bf16.mxu0 0
  %125 = vmatmul.mubr.bf16.gmra.mrb[0].mxu0 %v40
  %v126 = vpop.f32.mrb[0].mxu0
  %v127 = vadd.f32 0.0, %v126
  %v128 = vpop.f32.mrb[0].mxu0
  %v129 = vpop.f32.mrb[0].mxu0
  %v130 = vadd.f32 0.0, %v129
  %v131 = vpop.f32.mrb[0].mxu0
  %132 = vmatprep.mubr.bf16.mxu0 0
  %133 = vmatmul.mubr.bf16.gmra.mrb[0].mxu0 %v41
  %v134 = vpop.f32.mrb[0].mxu0
  %v135 = vadd.f32 0.0, %v134
  %v136 = vpop.f32.mrb[0].mxu0
  %v137 = vpop.f32.mrb[0].mxu0
  %v138 = vadd.f32 0.0, %v137
  %v139 = vpop.f32.mrb[0].mxu0
  %140 = vdwg.mxu0
  %141 = vst [vmem:[%s2] sm:$0xff] %v127
  %142 = vst [vmem:[%s2 + $0x8] sm:$0xff] %v130
  %143 = vst [vmem:[%s2 + $0x10] sm:$0xff] %v135
  %144 = vst [vmem:[%s2 + $0x18] sm:$0xff] %v138
  // Predicated region
  $region10: #{tta_forward.1} parent=0 // pred_check
    _
  $region11: #{tta_forward.1} parent=0 // pred_check_branch
    %146 = sbr.rel (0) target = $region13
  $region12: #{tta_forward.1} parent=0 // pred_region
    _
  $region13: #{tta_forward.1} parent=0 // pred_fallthru
    _
  // Predicated region
  $region14: #{tta_forward.1} parent=0 // pred_check
    _
  $region15: #{tta_forward.1} parent=0 // pred_check_branch
    %148 = sbr.rel (0) target = $region17
  $region16: #{tta_forward.1} parent=0 // pred_region
    _
  $region17: #{tta_forward.1} parent=0 // pred_fallthru
    _

</llo_original>
